<compile_context>
chip_gen: v7x
topology: tpu7x:2x2x1
jax: 0.10.0
libtpu: 0.0.40
codegen_flags: <defaults>
</compile_context>

<pallas_src>
import jax
import jax.numpy as jnp
import numpy as np
from jax.experimental import pallas as pl
from jax.experimental.pallas import tpu as pltpu


def _round_up(x, m):
    return (x + m - 1) // m * m


def _make_kernel(S, S_pad, T, wdt):
    """Build the decode-steps kernel for static (S, S_pad, T, compute dtype)."""

    def kernel(
        emb_gates_ref,   # (T, 4H)       emb @ W_ih[:, :I]^T + b_ih + b_hh
        h0_ref,          # (1, H)        initial hidden state
        c0_ref,          # (1, H)        initial cell state
        enc_ref,         # (S_pad, H)    encoder outputs (zero-padded rows)
        enc_proj_ref,    # (S_pad, H)    enc @ fc_encoder.W^T (precomputed)
        wh_ref,          # (H, H)        fc_hidden.W^T
        v_ref,           # (1, H)        attention vector ("weight")
        wctx_ref,        # (H, 4H)       W_ih[:, I:]^T  (context -> gates)
        whh_ref,         # (H, 4H)       W_hh^T
        wcls_ref,        # (H, O_pad)    classifier.W^T (lane-padded)
        bcls_ref,        # (1, O_pad)    classifier bias (lane-padded)
        out_ref,         # (T_pad, O_pad)  per-step logits
        attn_ref,        # (T_pad, S_pad)  per-step attention weights
        h_out_ref,       # (1, H)        final hidden state
        c_out_ref,       # (1, H)        final cell state
        h_hist_ref,      # VMEM scratch (T_pad, H): hidden-state history
    ):
        H = h0_ref.shape[-1]

        # Zero the history scratch once; padded tail rows feed the batched
        # classifier matmul and are sliced away in the wrapper.
        h_hist_ref[...] = jnp.zeros_like(h_hist_ref)

        # Loop-invariant lane mask for padded attention positions.
        if S < S_pad:
            lane = jax.lax.broadcasted_iota(jnp.int32, (1, S_pad), 1)
            score_mask = lane < S
        else:
            score_mask = None

        def step(t, h, c):
            # ---- Bahdanau additive attention (f32 path) -------------------
            hp = jnp.dot(h.astype(wdt), wh_ref[...],
                         preferred_element_type=jnp.float32)        # (1, H)
            x = jnp.tanh(hp + enc_proj_ref[...])                    # (S_pad, H)
            # alignment scores as a lane-dense row: contract v with x over H
            scores = jax.lax.dot_general(
                v_ref[...], x, (((1,), (1,)), ((), ())),
                preferred_element_type=jnp.float32)                 # (1, S_pad)
            if score_mask is not None:
                scores = jnp.where(score_mask, scores, jnp.float32(-1e30))
            m = jnp.max(scores, axis=1, keepdims=True)
            e = jnp.exp(scores - m)
            denom = jnp.sum(e, axis=1, keepdims=True)
            inv = pl.reciprocal(denom, approx=True)
            inv = inv * (2.0 - denom * inv)        # Newton step -> f32 accuracy
            attn = e * inv                                          # (1, S_pad)
            attn_ref[pl.ds(t, 1), :] = attn

            # context vector on the MXU: (1, S_pad) @ (S_pad, H) -> (1, H)
            ctx = jnp.dot(attn, enc_ref[...],
                          preferred_element_type=jnp.float32)

            # ---- one LSTM step (emb contribution precomputed) -------------
            gates = (
                emb_gates_ref[pl.ds(t, 1), :]
                + jnp.dot(ctx.astype(wdt), wctx_ref[...],
                          preferred_element_type=jnp.float32)
                + jnp.dot(h.astype(wdt), whh_ref[...],
                          preferred_element_type=jnp.float32))      # (1, 4H)

            i_g = jax.nn.sigmoid(gates[:, 0 * H:1 * H])
            f_g = jax.nn.sigmoid(gates[:, 1 * H:2 * H])
            g_g = jnp.tanh(gates[:, 2 * H:3 * H])
            o_g = jax.nn.sigmoid(gates[:, 3 * H:4 * H])
            c_new = f_g * c + i_g * g_g
            h_new = o_g * jnp.tanh(c_new)
            h_hist_ref[pl.ds(t, 1), :] = h_new
            return h_new, c_new

        if T <= 16:
            # fully static unroll: all slices / stores at static offsets
            h, c = h0_ref[...], c0_ref[...]
            for t in range(T):
                h, c = step(t, h, c)
            h_fin, c_fin = h, c
        else:
            h_fin, c_fin = jax.lax.fori_loop(
                0, T, lambda t, hc: step(t, *hc),
                (h0_ref[...], c0_ref[...]))

        h_out_ref[...] = h_fin
        c_out_ref[...] = c_fin

        # Batched classifier over all T steps: one lane-dense MXU matmul.
        out_ref[...] = (
            jnp.dot(h_hist_ref[...].astype(wdt), wcls_ref[...],
                    preferred_element_type=jnp.float32)
            + bcls_ref[...])

    return kernel


def bahdanau_decoder_steps(emb_seq, hidden, encoder_outputs, params,
                           compute_dtype=jnp.float32):
    """Run T decode steps (teacher-forced embedded inputs) in ONE pallas_call.

    emb_seq: (T, I)  -- per-step `inputs[0].view(1, -1)` rows.
    hidden:  ((1,1,H), (1,1,H)); encoder_outputs: (1, S, H).
    Returns (out_seq (T, O), hidden ((1,1,H), (1,1,H)), attn_seq (T, S)).
    """
    T, I = emb_seq.shape
    H = hidden[0].shape[-1]
    enc = encoder_outputs.reshape(-1, H).astype(jnp.float32)   # .squeeze()
    S = enc.shape[0]
    O = params["w_cls"].shape[0]
    wdt = compute_dtype

    S_pad = _round_up(S, 128)      # lane-dense attention scores / output
    O_pad = _round_up(O, 128)      # lane-dense classifier output
    T_pad = _round_up(T, 8)        # sublane-aligned history / logits

    # ---- step-invariant precompute (plain XLA, runs once) -----------------
    enc_pad = jnp.zeros((S_pad, H), jnp.float32).at[:S].set(enc)
    enc_proj = enc_pad @ params["w_fc_encoder"].T.astype(jnp.float32)

    w_ih = params["w_ih"].astype(jnp.float32)                     # (4H, I+H)
    b = (params["b_ih"] + params["b_hh"]).reshape(1, 4 * H).astype(jnp.float32)
    emb_gates = emb_seq.astype(jnp.float32) @ w_ih[:, :I].T + b   # (T, 4H)

    wh_t = params["w_fc_hidden"].T.astype(wdt)                    # (H, H)
    v_row = params["attn_v"].reshape(1, H).astype(jnp.float32)    # (1, H)
    wctx_t = w_ih[:, I:].T.astype(wdt)                            # (H, 4H)
    whh_t = params["w_hh"].T.astype(wdt)                          # (H, 4H)
    wcls_t = jnp.zeros((H, O_pad), wdt).at[:, :O].set(
        params["w_cls"].T.astype(wdt))                            # (H, O_pad)
    bcls = jnp.zeros((1, O_pad), jnp.float32).at[:, :O].set(
        params["b_cls"].reshape(1, O).astype(jnp.float32))        # (1, O_pad)

    h0 = hidden[0].reshape(1, H).astype(jnp.float32)
    c0 = hidden[1].reshape(1, H).astype(jnp.float32)

    def full(shape):               # fully-resident VMEM block
        return pl.BlockSpec(shape, lambda i: (0,) * len(shape))

    out_pad, attn_pad, h_fin, c_fin = pl.pallas_call(
        _make_kernel(S, S_pad, T, wdt),
        grid=(1,),
        out_shape=(
            jax.ShapeDtypeStruct((T_pad, O_pad), jnp.float32),
            jax.ShapeDtypeStruct((T_pad, S_pad), jnp.float32),
            jax.ShapeDtypeStruct((1, H), jnp.float32),
            jax.ShapeDtypeStruct((1, H), jnp.float32),
        ),
        in_specs=[
            full((T, 4 * H)),       # emb_gates
            full((1, H)),           # h0
            full((1, H)),           # c0
            full((S_pad, H)),       # encoder outputs (zero-padded rows)
            full((S_pad, H)),       # enc @ fc_encoder.W^T
            full((H, H)),           # fc_hidden.W^T
            full((1, H)),           # attention vector
            full((H, 4 * H)),       # W_ih[:, I:]^T (context -> gates)
            full((H, 4 * H)),       # W_hh^T
            full((H, O_pad)),       # classifier.W^T (lane-padded)
            full((1, O_pad)),       # classifier bias (lane-padded)
        ],
        out_specs=(
            full((T_pad, O_pad)),   # per-step logits
            full((T_pad, S_pad)),   # per-step attention weights
            full((1, H)),           # final h
            full((1, H)),           # final c
        ),
        scratch_shapes=[pltpu.VMEM((T_pad, H), jnp.float32)],
        compiler_params=pltpu.CompilerParams(
            dimension_semantics=("arbitrary",)),
    )(emb_gates, h0, c0, enc_pad, enc_proj, wh_t, v_row, wctx_t, whh_t,
      wcls_t, bcls)

    hidden_out = (h_fin.reshape(1, 1, H), c_fin.reshape(1, 1, H))
    return out_pad[:T, :O], hidden_out, attn_pad[:T, :S]


def bahdanau_decoder(inputs, hidden, encoder_outputs, params,
                     compute_dtype=jnp.float32):
    """Single forward step with the original module's shapes (T = 1).
    inputs: (1, I, 1); hidden: ((1,1,H), (1,1,H)); encoder_outputs: (1, S, H).
    Returns (output (1, O), hidden, attn_weights (1, S)) like PyTorch forward.
    """
    I = inputs.shape[1]
    emb_seq = inputs[0].reshape(1, I)             # embedded.view(1, -1)
    out_seq, hidden_out, attn_seq = bahdanau_decoder_steps(
        emb_seq, hidden, encoder_outputs, params, compute_dtype)
    return out_seq[0:1], hidden_out, attn_seq[0:1]


def reference_step(emb, h, c, enc, p):
    """One decoder step in pure JAX (dropout = identity).
    emb: (1, I); h, c: (1, H); enc: (S, H)."""
    H = h.shape[-1]
    x = jnp.tanh(h @ p["w_fc_hidden"].T + enc @ p["w_fc_encoder"].T)
    scores = x @ p["attn_v"].reshape(H, 1)
    attn = jax.nn.softmax(scores.reshape(1, -1), axis=1)      # (1, S)
    ctx = attn @ enc                                          # (1, H)
    lstm_in = jnp.concatenate([emb, ctx], axis=1)
    gates = lstm_in @ p["w_ih"].T + p["b_ih"] + h @ p["w_hh"].T + p["b_hh"]
    i_g, f_g, g_g, o_g = jnp.split(gates, 4, axis=1)
    c_new = jax.nn.sigmoid(f_g) * c + jax.nn.sigmoid(i_g) * jnp.tanh(g_g)
    h_new = jax.nn.sigmoid(o_g) * jnp.tanh(c_new)
    out = h_new @ p["w_cls"].T + p["b_cls"]
    return out, h_new, c_new, attn


if __name__ == "__main__":
    H, I, S, O, T = 32, 8, 8, 8, 6   # hidden, input, seq_len, output, steps
    key = jax.random.PRNGKey(0)
    ks = jax.random.split(key, 14)
    sc = 0.1

    params = {
        "w_fc_hidden":  jax.random.normal(ks[0], (H, H), jnp.float32) * sc,
        "w_fc_encoder": jax.random.normal(ks[1], (H, H), jnp.float32) * sc,
        "attn_v":       jax.random.normal(ks[2], (1, H), jnp.float32) * sc,
        "w_ih":         jax.random.normal(ks[3], (4 * H, H + I), jnp.float32) * sc,
        "w_hh":         jax.random.normal(ks[4], (4 * H, H), jnp.float32) * sc,
        "b_ih":         jax.random.normal(ks[5], (4 * H,), jnp.float32) * sc,
        "b_hh":         jax.random.normal(ks[6], (4 * H,), jnp.float32) * sc,
        "w_cls":        jax.random.normal(ks[7], (O, H), jnp.float32) * sc,
        "b_cls":        jax.random.normal(ks[8], (O,), jnp.float32) * sc,
    }
    # attn_combine (hidden*2 -> hidden) is declared in __init__ but never used
    # in forward(), so it is omitted.

    inputs = jax.random.normal(ks[9], (1, I, 1), jnp.float32)
    hidden = (jax.random.normal(ks[10], (1, 1, H), jnp.float32),
              jax.random.normal(ks[11], (1, 1, H), jnp.float32))
    encoder_outputs = jax.random.normal(ks[12], (1, S, H), jnp.float32)
    enc = encoder_outputs.reshape(S, H)

    # ---- single step: exact module-forward semantics ----------------------
    out, hid, attn = bahdanau_decoder(inputs, hidden, encoder_outputs, params)
    (out, hid, attn) = jax.block_until_ready((out, hid, attn))

    r_out, r_h, r_c, r_attn = reference_step(
        inputs[0].reshape(1, I), hidden[0].reshape(1, H),
        hidden[1].reshape(1, H), enc, params)
    assert np.allclose(np.asarray(out), np.asarray(r_out), rtol=1e-3, atol=1e-4)
    assert np.allclose(np.asarray(hid[0]).reshape(1, H), np.asarray(r_h),
                       rtol=1e-3, atol=1e-4)
    assert np.allclose(np.asarray(hid[1]).reshape(1, H), np.asarray(r_c),
                       rtol=1e-3, atol=1e-4)
    assert np.allclose(np.asarray(attn), np.asarray(r_attn), rtol=1e-3, atol=1e-4)

    # ---- T fused decode steps in one pallas_call (everything resident) ----
    emb_seq = jax.random.normal(ks[13], (T, I), jnp.float32)
    outs, hid_T, attns = bahdanau_decoder_steps(
        emb_seq, hidden, encoder_outputs, params)
    (outs, hid_T, attns) = jax.block_until_ready((outs, hid_T, attns))

    h_r = hidden[0].reshape(1, H)
    c_r = hidden[1].reshape(1, H)
    for t in range(T):
        r_out, h_r, c_r, r_attn = reference_step(emb_seq[t:t + 1], h_r, c_r,
                                                 enc, params)
        assert np.allclose(np.asarray(outs[t:t + 1]), np.asarray(r_out),
                           rtol=1e-3, atol=1e-4)
        assert np.allclose(np.asarray(attns[t:t + 1]), np.asarray(r_attn),
                           rtol=1e-3, atol=1e-4)
    assert np.allclose(np.asarray(hid_T[0]).reshape(1, H), np.asarray(h_r),
                       rtol=1e-3, atol=1e-4)
    assert np.allclose(np.asarray(hid_T[1]).reshape(1, H), np.asarray(c_r),
                       rtol=1e-3, atol=1e-4)

    print("KERNEL_OK")
</pallas_src>

<mosaic_0001>
module attributes {stable_mosaic.version = 11 : i64} {
  func.func @kernel(%arg0: i32, %arg1: memref<1x128xf32, #tpu.memory_space<vmem>>, %arg2: memref<1x32xf32, #tpu.memory_space<vmem>>, %arg3: memref<1x32xf32, #tpu.memory_space<vmem>>, %arg4: memref<128x32xf32, #tpu.memory_space<vmem>>, %arg5: memref<128x32xf32, #tpu.memory_space<vmem>>, %arg6: memref<32x32xf32, #tpu.memory_space<vmem>>, %arg7: memref<1x32xf32, #tpu.memory_space<vmem>>, %arg8: memref<32x128xf32, #tpu.memory_space<vmem>>, %arg9: memref<32x128xf32, #tpu.memory_space<vmem>>, %arg10: memref<32x128xf32, #tpu.memory_space<vmem>>, %arg11: memref<1x128xf32, #tpu.memory_space<vmem>>, %arg12: memref<8x128xf32, #tpu.memory_space<vmem>>, %arg13: memref<8x128xf32, #tpu.memory_space<vmem>>, %arg14: memref<1x32xf32, #tpu.memory_space<vmem>>, %arg15: memref<1x32xf32, #tpu.memory_space<vmem>>, %arg16: memref<8x32xf32, #tpu.memory_space<vmem>>) attributes {dimension_semantics = [#tpu.dimension_semantics<arbitrary>], iteration_bounds = array<i64: 1>, scalar_prefetch = 0 : i64, scratch_operands = 1 : i64, tpu.core_type = #tpu.core_type<tc>, window_params = [{pipeline_mode = #tpu.pipeline_mode<synchronous>, transform_indices = @transform_0, window_bounds = array<i64: 1, 128>}, {pipeline_mode = #tpu.pipeline_mode<synchronous>, transform_indices = @transform_1, window_bounds = array<i64: 1, 32>}, {pipeline_mode = #tpu.pipeline_mode<synchronous>, transform_indices = @transform_2, window_bounds = array<i64: 1, 32>}, {pipeline_mode = #tpu.pipeline_mode<synchronous>, transform_indices = @transform_3, window_bounds = array<i64: 128, 32>}, {pipeline_mode = #tpu.pipeline_mode<synchronous>, transform_indices = @transform_4, window_bounds = array<i64: 128, 32>}, {pipeline_mode = #tpu.pipeline_mode<synchronous>, transform_indices = @transform_5, window_bounds = array<i64: 32, 32>}, {pipeline_mode = #tpu.pipeline_mode<synchronous>, transform_indices = @transform_6, window_bounds = array<i64: 1, 32>}, {pipeline_mode = #tpu.pipeline_mode<synchronous>, transform_indices = @transform_7, window_bounds = array<i64: 32, 128>}, {pipeline_mode = #tpu.pipeline_mode<synchronous>, transform_indices = @transform_8, window_bounds = array<i64: 32, 128>}, {pipeline_mode = #tpu.pipeline_mode<synchronous>, transform_indices = @transform_9, window_bounds = array<i64: 32, 128>}, {pipeline_mode = #tpu.pipeline_mode<synchronous>, transform_indices = @transform_10, window_bounds = array<i64: 1, 128>}, {pipeline_mode = #tpu.pipeline_mode<synchronous>, transform_indices = @transform_11, window_bounds = array<i64: 8, 128>}, {pipeline_mode = #tpu.pipeline_mode<synchronous>, transform_indices = @transform_12, window_bounds = array<i64: 8, 128>}, {pipeline_mode = #tpu.pipeline_mode<synchronous>, transform_indices = @transform_13, window_bounds = array<i64: 1, 32>}, {pipeline_mode = #tpu.pipeline_mode<synchronous>, transform_indices = @transform_14, window_bounds = array<i64: 1, 32>}]} {
    %cst = arith.constant 0.000000e+00 : f32
    %0 = vector.broadcast %cst : f32 to vector<8x32xf32>
    %c0 = arith.constant 0 : index
    %c0_0 = arith.constant 0 : index
    %1 = vector.load %arg16[%c0, %c0_0] : memref<8x32xf32, #tpu.memory_space<vmem>>, vector<8x32xf32>
    tpu.vector_store %arg16[%c0, %c0_0], %0 {strides = array<i32>} : memref<8x32xf32, #tpu.memory_space<vmem>>, vector<8x32xf32>,
    %2 = tpu.iota {dimensions = array<i32: 1>} : vector<1x128xi32>
    %c8_i32 = arith.constant 8 : i32
    %3 = vector.broadcast %c8_i32 : i32 to vector<1x128xi32>
    %4 = arith.cmpi slt, %2, %3 : vector<1x128xi32>
    %c0_1 = arith.constant 0 : index
    %c0_2 = arith.constant 0 : index
    %5 = vector.load %arg2[%c0_1, %c0_2] : memref<1x32xf32, #tpu.memory_space<vmem>>, vector<1x32xf32>
    %c0_3 = arith.constant 0 : index
    %c0_4 = arith.constant 0 : index
    %6 = vector.load %arg3[%c0_3, %c0_4] : memref<1x32xf32, #tpu.memory_space<vmem>>, vector<1x32xf32>
    %c0_5 = arith.constant 0 : index
    %c0_6 = arith.constant 0 : index
    %7 = vector.load %arg6[%c0_5, %c0_6] : memref<32x32xf32, #tpu.memory_space<vmem>>, vector<32x32xf32>
    %cst_7 = arith.constant dense<0.000000e+00> : vector<1x32xf32>
    %8 = tpu.matmul %5, %7, %cst_7 {dimension_numbers = #tpu.dot_dimension_numbers<[1], [0], [0], [1], [0, 0, 1, 1], [], []>} : vector<1x32xf32>, vector<32x32xf32>, vector<1x32xf32> -> vector<1x32xf32>
    %c0_8 = arith.constant 0 : index
    %c0_9 = arith.constant 0 : index
    %9 = vector.load %arg5[%c0_8, %c0_9] : memref<128x32xf32, #tpu.memory_space<vmem>>, vector<128x32xf32>
    %10 = vector.broadcast %8 : vector<1x32xf32> to vector<128x32xf32>
    %11 = arith.addf %10, %9 : vector<128x32xf32>
    %12 = math.tanh %11 : vector<128x32xf32>
    %c0_10 = arith.constant 0 : index
    %c0_11 = arith.constant 0 : index
    %13 = vector.load %arg7[%c0_10, %c0_11] : memref<1x32xf32, #tpu.memory_space<vmem>>, vector<1x32xf32>
    %cst_12 = arith.constant dense<0.000000e+00> : vector<1x128xf32>
    %14 = tpu.matmul %13, %12, %cst_12 {dimension_numbers = #tpu.dot_dimension_numbers<[1], [1], [0], [0], [0, 0, 1, 0], [], []>} : vector<1x32xf32>, vector<128x32xf32>, vector<1x128xf32> -> vector<1x128xf32>
    %cst_13 = arith.constant -1.000000e+30 : f32
    %15 = vector.broadcast %cst_13 : f32 to vector<1x128xf32>
    %16 = arith.select %4, %14, %15 : vector<1x128xi1>, vector<1x128xf32>
    %cst_14 = arith.constant dense<0xFF800000> : vector<1xf32>
    %17 = vector.multi_reduction <maximumf>, %16, %cst_14 [1] : vector<1x128xf32> to vector<1xf32>
    %18 = vector.shape_cast %17 : vector<1xf32> to vector<1x1xf32>
    %19 = vector.broadcast %18 : vector<1x1xf32> to vector<1x128xf32>
    %20 = arith.subf %16, %19 : vector<1x128xf32>
    %21 = math.exp %20 : vector<1x128xf32>
    %cst_15 = arith.constant dense<0.000000e+00> : vector<1xf32>
    %22 = vector.multi_reduction <add>, %21, %cst_15 [1] : vector<1x128xf32> to vector<1xf32>
    %23 = vector.shape_cast %22 : vector<1xf32> to vector<1x1xf32>
    %24 = tpu.reciprocal %23 {approx = true} : vector<1x1xf32> -> vector<1x1xf32>
    %25 = arith.mulf %23, %24 : vector<1x1xf32>
    %cst_16 = arith.constant 2.000000e+00 : f32
    %26 = vector.broadcast %cst_16 : f32 to vector<1x1xf32>
    %27 = arith.subf %26, %25 : vector<1x1xf32>
    %28 = arith.mulf %24, %27 : vector<1x1xf32>
    %29 = vector.broadcast %28 : vector<1x1xf32> to vector<1x128xf32>
    %30 = arith.mulf %21, %29 : vector<1x128xf32>
    %c0_17 = arith.constant 0 : index
    %c0_18 = arith.constant 0 : index
    %31 = vector.load %arg13[%c0_17, %c0_18] : memref<8x128xf32, #tpu.memory_space<vmem>>, vector<1x128xf32>
    tpu.vector_store %arg13[%c0_17, %c0_18], %30 {strides = array<i32>} : memref<8x128xf32, #tpu.memory_space<vmem>>, vector<1x128xf32>,
    %c0_19 = arith.constant 0 : index
    %c0_20 = arith.constant 0 : index
    %32 = vector.load %arg4[%c0_19, %c0_20] : memref<128x32xf32, #tpu.memory_space<vmem>>, vector<128x32xf32>
    %cst_21 = arith.constant dense<0.000000e+00> : vector<1x32xf32>
    %33 = tpu.matmul %30, %32, %cst_21 {dimension_numbers = #tpu.dot_dimension_numbers<[1], [0], [0], [1], [0, 0, 1, 1], [], []>} : vector<1x128xf32>, vector<128x32xf32>, vector<1x32xf32> -> vector<1x32xf32>
    %c0_22 = arith.constant 0 : index
    %c0_23 = arith.constant 0 : index
    %34 = vector.load %arg1[%c0_22, %c0_23] : memref<1x128xf32, #tpu.memory_space<vmem>>, vector<1x128xf32>
    %c0_24 = arith.constant 0 : index
    %c0_25 = arith.constant 0 : index
    %35 = vector.load %arg8[%c0_24, %c0_25] : memref<32x128xf32, #tpu.memory_space<vmem>>, vector<32x128xf32>
    %cst_26 = arith.constant dense<0.000000e+00> : vector<1x128xf32>
    %36 = tpu.matmul %33, %35, %cst_26 {dimension_numbers = #tpu.dot_dimension_numbers<[1], [0], [0], [1], [0, 0, 1, 1], [], []>} : vector<1x32xf32>, vector<32x128xf32>, vector<1x128xf32> -> vector<1x128xf32>
    %37 = arith.addf %34, %36 : vector<1x128xf32>
    %c0_27 = arith.constant 0 : index
    %c0_28 = arith.constant 0 : index
    %38 = vector.load %arg9[%c0_27, %c0_28] : memref<32x128xf32, #tpu.memory_space<vmem>>, vector<32x128xf32>
    %cst_29 = arith.constant dense<0.000000e+00> : vector<1x128xf32>
    %39 = tpu.matmul %5, %38, %cst_29 {dimension_numbers = #tpu.dot_dimension_numbers<[1], [0], [0], [1], [0, 0, 1, 1], [], []>} : vector<1x32xf32>, vector<32x128xf32>, vector<1x128xf32> -> vector<1x128xf32>
    %40 = arith.addf %37, %39 : vector<1x128xf32>
    %41 = vector.extract_strided_slice %40 {offsets = [0, 0], sizes = [1, 32], strides = [1, 1]} : vector<1x128xf32> to vector<1x32xf32>
    %42 = arith.negf %41 : vector<1x32xf32>
    %43 = math.exp %42 : vector<1x32xf32>
    %cst_30 = arith.constant 1.000000e+00 : f32
    %44 = vector.broadcast %cst_30 : f32 to vector<1x32xf32>
    %45 = arith.addf %44, %43 : vector<1x32xf32>
    %46 = arith.divf %44, %45 : vector<1x32xf32>
    %47 = vector.extract_strided_slice %40 {offsets = [0, 32], sizes = [1, 32], strides = [1, 1]} : vector<1x128xf32> to vector<1x32xf32>
    %48 = arith.negf %47 : vector<1x32xf32>
    %49 = math.exp %48 : vector<1x32xf32>
    %cst_31 = arith.constant 1.000000e+00 : f32
    %50 = vector.broadcast %cst_31 : f32 to vector<1x32xf32>
    %51 = arith.addf %50, %49 : vector<1x32xf32>
    %52 = arith.divf %50, %51 : vector<1x32xf32>
    %53 = vector.extract_strided_slice %40 {offsets = [0, 64], sizes = [1, 32], strides = [1, 1]} : vector<1x128xf32> to vector<1x32xf32>
    %54 = math.tanh %53 : vector<1x32xf32>
    %55 = vector.extract_strided_slice %40 {offsets = [0, 96], sizes = [1, 32], strides = [1, 1]} : vector<1x128xf32> to vector<1x32xf32>
    %56 = arith.negf %55 : vector<1x32xf32>
    %57 = math.exp %56 : vector<1x32xf32>
    %cst_32 = arith.constant 1.000000e+00 : f32
    %58 = vector.broadcast %cst_32 : f32 to vector<1x32xf32>
    %59 = arith.addf %58, %57 : vector<1x32xf32>
    %60 = arith.divf %58, %59 : vector<1x32xf32>
    %61 = arith.mulf %52, %6 : vector<1x32xf32>
    %62 = arith.mulf %46, %54 : vector<1x32xf32>
    %63 = arith.addf %61, %62 : vector<1x32xf32>
    %64 = math.tanh %63 : vector<1x32xf32>
    %65 = arith.mulf %60, %64 : vector<1x32xf32>
    %c0_33 = arith.constant 0 : index
    %c0_34 = arith.constant 0 : index
    %66 = vector.load %arg16[%c0_33, %c0_34] : memref<8x32xf32, #tpu.memory_space<vmem>>, vector<1x32xf32>
    tpu.vector_store %arg16[%c0_33, %c0_34], %65 {strides = array<i32>} : memref<8x32xf32, #tpu.memory_space<vmem>>, vector<1x32xf32>,
    %c0_35 = arith.constant 0 : index
    %c0_36 = arith.constant 0 : index
    %67 = vector.load %arg14[%c0_35, %c0_36] : memref<1x32xf32, #tpu.memory_space<vmem>>, vector<1x32xf32>
    tpu.vector_store %arg14[%c0_35, %c0_36], %65 {strides = array<i32>} : memref<1x32xf32, #tpu.memory_space<vmem>>, vector<1x32xf32>,
    %c0_37 = arith.constant 0 : index
    %c0_38 = arith.constant 0 : index
    %68 = vector.load %arg15[%c0_37, %c0_38] : memref<1x32xf32, #tpu.memory_space<vmem>>, vector<1x32xf32>
    tpu.vector_store %arg15[%c0_37, %c0_38], %63 {strides = array<i32>} : memref<1x32xf32, #tpu.memory_space<vmem>>, vector<1x32xf32>,
    %c0_39 = arith.constant 0 : index
    %c0_40 = arith.constant 0 : index
    %69 = vector.load %arg16[%c0_39, %c0_40] : memref<8x32xf32, #tpu.memory_space<vmem>>, vector<8x32xf32>
    %c0_41 = arith.constant 0 : index
    %c0_42 = arith.constant 0 : index
    %70 = vector.load %arg10[%c0_41, %c0_42] : memref<32x128xf32, #tpu.memory_space<vmem>>, vector<32x128xf32>
    %cst_43 = arith.constant dense<0.000000e+00> : vector<8x128xf32>
    %71 = tpu.matmul %69, %70, %cst_43 {dimension_numbers = #tpu.dot_dimension_numbers<[1], [0], [0], [1], [0, 0, 1, 1], [], []>} : vector<8x32xf32>, vector<32x128xf32>, vector<8x128xf32> -> vector<8x128xf32>
    %c0_44 = arith.constant 0 : index
    %c0_45 = arith.constant 0 : index
    %72 = vector.load %arg11[%c0_44, %c0_45] : memref<1x128xf32, #tpu.memory_space<vmem>>, vector<1x128xf32>
    %73 = vector.broadcast %72 : vector<1x128xf32> to vector<8x128xf32>
    %74 = arith.addf %71, %73 : vector<8x128xf32>
    %c0_46 = arith.constant 0 : index
    %c0_47 = arith.constant 0 : index
    %75 = vector.load %arg12[%c0_46, %c0_47] : memref<8x128xf32, #tpu.memory_space<vmem>>, vector<8x128xf32>
    tpu.vector_store %arg12[%c0_46, %c0_47], %74 {strides = array<i32>} : memref<8x128xf32, #tpu.memory_space<vmem>>, vector<8x128xf32>,
    return
  }
  func.func @transform_0(%arg0: i32) -> (i32, i32) {
    %c0_i32 = arith.constant 0 : i32
    %c0_i32_0 = arith.constant 0 : i32
    %c0_i32_1 = arith.constant 0 : i32
    return %c0_i32, %c0_i32_0 : i32, i32
  }
  func.func @transform_1(%arg0: i32) -> (i32, i32) {
    %c0_i32 = arith.constant 0 : i32
    %c0_i32_0 = arith.constant 0 : i32
    %c0_i32_1 = arith.constant 0 : i32
    return %c0_i32, %c0_i32_0 : i32, i32
  }
  func.func @transform_2(%arg0: i32) -> (i32, i32) {
    %c0_i32 = arith.constant 0 : i32
    %c0_i32_0 = arith.constant 0 : i32
    %c0_i32_1 = arith.constant 0 : i32
    return %c0_i32, %c0_i32_0 : i32, i32
  }
  func.func @transform_3(%arg0: i32) -> (i32, i32) {
    %c0_i32 = arith.constant 0 : i32
    %c0_i32_0 = arith.constant 0 : i32
    %c0_i32_1 = arith.constant 0 : i32
    return %c0_i32, %c0_i32_0 : i32, i32
  }
  func.func @transform_4(%arg0: i32) -> (i32, i32) {
    %c0_i32 = arith.constant 0 : i32
    %c0_i32_0 = arith.constant 0 : i32
    %c0_i32_1 = arith.constant 0 : i32
    return %c0_i32, %c0_i32_0 : i32, i32
  }
  func.func @transform_5(%arg0: i32) -> (i32, i32) {
    %c0_i32 = arith.constant 0 : i32
    %c0_i32_0 = arith.constant 0 : i32
    %c0_i32_1 = arith.constant 0 : i32
    return %c0_i32, %c0_i32_0 : i32, i32
  }
  func.func @transform_6(%arg0: i32) -> (i32, i32) {
    %c0_i32 = arith.constant 0 : i32
    %c0_i32_0 = arith.constant 0 : i32
    %c0_i32_1 = arith.constant 0 : i32
    return %c0_i32, %c0_i32_0 : i32, i32
  }
  func.func @transform_7(%arg0: i32) -> (i32, i32) {
    %c0_i32 = arith.constant 0 : i32
    %c0_i32_0 = arith.constant 0 : i32
    %c0_i32_1 = arith.constant 0 : i32
    return %c0_i32, %c0_i32_0 : i32, i32
  }
  func.func @transform_8(%arg0: i32) -> (i32, i32) {
    %c0_i32 = arith.constant 0 : i32
    %c0_i32_0 = arith.constant 0 : i32
    %c0_i32_1 = arith.constant 0 : i32
    return %c0_i32, %c0_i32_0 : i32, i32
  }
  func.func @transform_9(%arg0: i32) -> (i32, i32) {
    %c0_i32 = arith.constant 0 : i32
    %c0_i32_0 = arith.constant 0 : i32
    %c0_i32_1 = arith.constant 0 : i32
    return %c0_i32, %c0_i32_0 : i32, i32
  }
  func.func @transform_10(%arg0: i32) -> (i32, i32) {
    %c0_i32 = arith.constant 0 : i32
    %c0_i32_0 = arith.constant 0 : i32
    %c0_i32_1 = arith.constant 0 : i32
    return %c0_i32, %c0_i32_0 : i32, i32
  }
  func.func @transform_11(%arg0: i32) -> (i32, i32) {
    %c0_i32 = arith.constant 0 : i32
    %c0_i32_0 = arith.constant 0 : i32
    %c0_i32_1 = arith.constant 0 : i32
    return %c0_i32, %c0_i32_0 : i32, i32
  }
  func.func @transform_12(%arg0: i32) -> (i32, i32) {
    %c0_i32 = arith.constant 0 : i32
    %c0_i32_0 = arith.constant 0 : i32
    %c0_i32_1 = arith.constant 0 : i32
    return %c0_i32, %c0_i32_0 : i32, i32
  }
  func.func @transform_13(%arg0: i32) -> (i32, i32) {
    %c0_i32 = arith.constant 0 : i32
    %c0_i32_0 = arith.constant 0 : i32
    %c0_i32_1 = arith.constant 0 : i32
    return %c0_i32, %c0_i32_0 : i32, i32
  }
  func.func @transform_14(%arg0: i32) -> (i32, i32) {
    %c0_i32 = arith.constant 0 : i32
    %c0_i32_0 = arith.constant 0 : i32
    %c0_i32_1 = arith.constant 0 : i32
    return %c0_i32, %c0_i32_0 : i32, i32
  }
}

</mosaic_0001>

<llo_original>
// kernel: tpu_custom_call.1
$region0: #{tpu_custom_call.1}
  #allocation0 [shape = 'u32[]', space=smem, size = 0x4, offset = 0x4, fixed_abs, tag = 'smem constant byte address 0x4 - core index']
  #allocation1 [shape = 'u32[144,128]{1,0:T(1,128)}', space=vmem, size = 0x12000, scoped, tag = 'internal scratch']
  #allocation2 [shape = 'f32[8,32]{1,0:T(8,128)}', space=vmem, size = 0x1000, scoped, tag = 'scratch operand']
  %s0 = inlined_call_operand.vmem [shape: f32[1,128], index: 0, kind: input, shape index: {}]
  %s1 = inlined_call_operand.vmem [shape: f32[1,32], index: 1, kind: input, shape index: {}]
  %s2 = inlined_call_operand.vmem [shape: f32[1,32], index: 2, kind: input, shape index: {}]
  %s3 = inlined_call_operand.vmem [shape: f32[128,32], index: 3, kind: input, shape index: {}]
  %s4 = inlined_call_operand.vmem [shape: f32[128,32], index: 4, kind: input, shape index: {}]
  %s5 = inlined_call_operand.vmem [shape: f32[32,32], index: 5, kind: input, shape index: {}]
  %s6 = inlined_call_operand.vmem [shape: f32[1,32], index: 6, kind: input, shape index: {}]
  %s7 = inlined_call_operand.vmem [shape: f32[32,128], index: 7, kind: input, shape index: {}]
  %s8 = inlined_call_operand.vmem [shape: f32[32,128], index: 8, kind: input, shape index: {}]
  %s9 = inlined_call_operand.vmem [shape: f32[32,128], index: 9, kind: input, shape index: {}]
  %s10 = inlined_call_operand.vmem [shape: f32[1,128], index: 10, kind: input, shape index: {}]
  %s11 = inlined_call_operand.hbm [shape: f32[8,128], index: 11, kind: output, shape index: {0}]
  %s12 = inlined_call_operand.hbm [shape: f32[8,128], index: 12, kind: output, shape index: {1}]
  %s13 = inlined_call_operand.hbm [shape: f32[1,32], index: 13, kind: output, shape index: {2}]
  %s14 = inlined_call_operand.hbm [shape: f32[1,32], index: 14, kind: output, shape index: {3}]
  %15 = xla_tuple %s11, %s12, %s13, %s14
  %s16 = sld [smem:[#allocation0]]
  $region78: #{tpu_custom_call.1} parent=0
    _
  %s18 = ssub.s32 1, %s16
  %s19 = scalar_select 0, %s18, %s16
  $region1: #{tpu_custom_call.1} parent=0
    #allocation3 [shape = 'u8[4096]{0}', space=vmem, size = 0x1000, scoped, tag = 'output window, operand 0, single buffered']
    #allocation4 [shape = 's32[1]{0}', space=sflag, size = 0x4, scoped, tag = 'scoped memory for tpu_custom_call.1']
    #allocation5 [shape = 'u8[4096]{0}', space=vmem, size = 0x1000, scoped, tag = 'output window, operand 1, single buffered']
    #allocation6 [shape = 's32[1]{0}', space=sflag, size = 0x4, scoped, tag = 'scoped memory for tpu_custom_call.1']
    #allocation7 [shape = 'u8[512]{0}', space=vmem, size = 0x400, scoped, tag = 'output window, operand 2, single buffered']
    #allocation8 [shape = 'u8[512]{0}', space=vmem, size = 0x400, scoped, tag = 'output window, operand 3, single buffered']
    #allocation9 [shape = 's32[1]{0}', space=sflag, size = 0x4, scoped, tag = 'scoped memory for tpu_custom_call.1']
    %20 = vsyncpa [#allocation4], 0
    %21 = vsyncpa [#allocation6], 0
    %22 = vsyncpa [#allocation9], 0
    // Predicated region
    $region2: #{tpu_custom_call.1} parent=1 // pred_check
      _
    $region3: #{tpu_custom_call.1} parent=1 // pred_check_branch
      %24 = sbr.rel (0) target = $region5
    $region4: #{tpu_custom_call.1} parent=1 // pred_region
      _
    $region5: #{tpu_custom_call.1} parent=1 // pred_fallthru
      _
    // Predicated region
    $region6: #{tpu_custom_call.1} parent=1 // pred_check
      _
    $region7: #{tpu_custom_call.1} parent=1 // pred_check_branch
      %26 = sbr.rel (0) target = $region9
    $region8: #{tpu_custom_call.1} parent=1 // pred_region
      _
    $region9: #{tpu_custom_call.1} parent=1 // pred_fallthru
      _
    // Predicated region
    $region10: #{tpu_custom_call.1} parent=1 // pred_check
      _
    $region11: #{tpu_custom_call.1} parent=1 // pred_check_branch
      %28 = sbr.rel (0) target = $region13
    $region12: #{tpu_custom_call.1} parent=1 // pred_region
      _
    $region13: #{tpu_custom_call.1} parent=1 // pred_fallthru
      _
    // Predicated region
    $region14: #{tpu_custom_call.1} parent=1 // pred_check
      _
    $region15: #{tpu_custom_call.1} parent=1 // pred_check_branch
      %30 = sbr.rel (0) target = $region17
    $region16: #{tpu_custom_call.1} parent=1 // pred_region
      _
    $region17: #{tpu_custom_call.1} parent=1 // pred_fallthru
      _
    // Predicated region
    $region18: #{tpu_custom_call.1} parent=1 // pred_check
      _
    $region19: #{tpu_custom_call.1} parent=1 // pred_check_branch
      %32 = sbr.rel (0) target = $region21
    $region20: #{tpu_custom_call.1} parent=1 // pred_region
      _
    $region21: #{tpu_custom_call.1} parent=1 // pred_fallthru
      _
    // Predicated region
    $region22: #{tpu_custom_call.1} parent=1 // pred_check
      _
    $region23: #{tpu_custom_call.1} parent=1 // pred_check_branch
      %34 = sbr.rel (0) target = $region25
    $region24: #{tpu_custom_call.1} parent=1 // pred_region
      _
    $region25: #{tpu_custom_call.1} parent=1 // pred_fallthru
      _
    // Predicated region
    $region26: #{tpu_custom_call.1} parent=1 // pred_check
      _
    $region27: #{tpu_custom_call.1} parent=1 // pred_check_branch
      %36 = sbr.rel (0) target = $region29
    $region28: #{tpu_custom_call.1} parent=1 // pred_region
      _
    $region29: #{tpu_custom_call.1} parent=1 // pred_fallthru
      _
    // Predicated region
    $region30: #{tpu_custom_call.1} parent=1 // pred_check
      _
    $region31: #{tpu_custom_call.1} parent=1 // pred_check_branch
      %38 = sbr.rel (0) target = $region33
    $region32: #{tpu_custom_call.1} parent=1 // pred_region
      _
    $region33: #{tpu_custom_call.1} parent=1 // pred_fallthru
      _
    // Predicated region
    $region34: #{tpu_custom_call.1} parent=1 // pred_check
      _
    $region35: #{tpu_custom_call.1} parent=1 // pred_check_branch
      %40 = sbr.rel (0) target = $region37
    $region36: #{tpu_custom_call.1} parent=1 // pred_region
      _
    $region37: #{tpu_custom_call.1} parent=1 // pred_fallthru
      _
    // Predicated region
    $region38: #{tpu_custom_call.1} parent=1 // pred_check
      _
    $region39: #{tpu_custom_call.1} parent=1 // pred_check_branch
      %42 = sbr.rel (0) target = $region41
    $region40: #{tpu_custom_call.1} parent=1 // pred_region
      _
    $region41: #{tpu_custom_call.1} parent=1 // pred_fallthru
      _
    // Predicated region
    $region42: #{tpu_custom_call.1} parent=1 // pred_check
      _
    $region43: #{tpu_custom_call.1} parent=1 // pred_check_branch
      %44 = sbr.rel (0) target = $region45
    $region44: #{tpu_custom_call.1} parent=1 // pred_region
      _
    $region45: #{tpu_custom_call.1} parent=1 // pred_fallthru
      _
    %vm45 = vcmask 261120
    %46 = vst.msk [vmem:[#allocation2] sm:$0xff] %vm45, 0.0
    %v47 = vlaneseq
    %v48 = vand.u32 %v47, 127
    %vm49 = vcmp.lt.s32.totalorder %v48, 8
    %v50 = vld [vmem:[%s1] sm:$0x1]
    %v51 = vld [vmem:[%s2] sm:$0x1]
    %v52 = vld [vmem:[%s5] sm:$0xff]
    %v53 = vld [vmem:[%s5 + $0x8] sm:$0xff]
    %v54 = vld [vmem:[%s5 + $0x10] sm:$0xff]
    %v55 = vld [vmem:[%s5 + $0x18] sm:$0xff]
    %v57 = vsel %vm45, %v50, 0
    %59 = vmatprep.subr.mxu0 0.0
    %60 = vmatpush1.msra.mxu0 %v52
    %61 = vmatprep.subr.mxu0 0.0
    %62 = vmatpush1.msra.mxu0 %v53
    %63 = vmatprep.subr.mxu0 0.0
    %64 = vmatpush1.msra.mxu0 %v54
    %65 = vmatprep.subr.mxu0 0.0
    %66 = vmatpush1.msra.mxu0 %v55
    %67 = vmatprep.subr.mxu0 0.0
    %68 = vmatpush1.msra.mxu0 0.0
    %69 = vmatprep.subr.mxu0 0.0
    %70 = vmatpush1.msra.mxu0 0.0
    %71 = vmatprep.subr.mxu0 0.0
    %72 = vmatpush1.msra.mxu0 0.0
    %73 = vmatprep.subr.mxu0 0.0
    %74 = vmatpush1.msra.mxu0 0.0
    %75 = vmatprep.subr.mxu0 0.0
    %76 = vmatpush1.msra.mxu0 0.0
    %77 = vmatprep.subr.mxu0 0.0
    %78 = vmatpush1.msra.mxu0 0.0
    %79 = vmatprep.subr.mxu0 0.0
    %80 = vmatpush1.msra.mxu0 0.0
    %81 = vmatprep.subr.mxu0 0.0
    %82 = vmatpush1.msra.mxu0 0.0
    %83 = vmatprep.subr.mxu0 0.0
    %84 = vmatpush1.msra.mxu0 0.0
    %85 = vmatprep.subr.mxu0 0.0
    %86 = vmatpush1.msra.mxu0 0.0
    %87 = vmatprep.subr.mxu0 0.0
    %88 = vmatpush1.msra.mxu0 0.0
    %89 = vmatprep.subr.mxu0 0.0
    %90 = vmatpush1.msra.mxu0 0.0
    %91 = vmatprep.subr.mxu0 0.0
    %92 = vmatpush1.msra.mxu0 0.0
    %93 = vmatprep.subr.mxu0 0.0
    %94 = vmatpush1.msra.mxu0 0.0
    %95 = vmatprep.subr.mxu0 0.0
    %96 = vmatpush1.msra.mxu0 0.0
    %97 = vmatprep.subr.mxu0 0.0
    %98 = vmatpush1.msra.mxu0 0.0
    %99 = vmatprep.subr.mxu0 0.0
    %100 = vmatpush1.msra.mxu0 0.0
    %101 = vmatprep.subr.mxu0 0.0
    %102 = vmatpush1.msra.mxu0 0.0
    %103 = vmatprep.subr.mxu0 0.0
    %104 = vmatpush1.msra.mxu0 0.0
    %105 = vmatprep.subr.mxu0 0.0
    %106 = vmatpush1.msra.mxu0 0.0
    %107 = vmatprep.subr.mxu0 0.0
    %108 = vmatpush1.msra.mxu0 0.0
    %109 = vmatprep.subr.mxu0 0.0
    %110 = vmatpush1.msra.mxu0 0.0
    %111 = vmatprep.subr.mxu0 0.0
    %112 = vmatpush1.msra.mxu0 0.0
    %113 = vmatprep.subr.mxu0 0.0
    %114 = vmatpush1.msra.mxu0 0.0
    %115 = vmatprep.subr.mxu0 0.0
    %116 = vmatpush1.msra.mxu0 0.0
    %117 = vmatprep.subr.mxu0 0.0
    %118 = vmatpush1.msra.mxu0 0.0
    %119 = vmatprep.subr.mxu0 0.0
    %120 = vmatpush1.msra.mxu0 0.0
    %121 = vmatprep.subr.mxu0 0.0
    %122 = vmatpush1.msra.mxu0 0.0
    %123 = vmatprep.mubr.f32.mxu0 0.0
    %124 = vmatmul.mubr.f32.gmra.mrb[0].mxu0 %v57
    %v125 = vpop.f32.mrb[0].mxu0
    %v126 = vadd.f32 0.0, %v125
    %v127 = vpop.f32.mrb[0].mxu0
    %128 = vdwg.mxu0
    %v129 = vld [vmem:[%s4] sm:$0xff]
    %v130 = vld [vmem:[%s4 + $0x8] sm:$0xff]
    %v131 = vld [vmem:[%s4 + $0x10] sm:$0xff]
    %v132 = vld [vmem:[%s4 + $0x18] sm:$0xff]
    %v133 = vld [vmem:[%s4 + $0x20] sm:$0xff]
    %v134 = vld [vmem:[%s4 + $0x28] sm:$0xff]
    %v135 = vld [vmem:[%s4 + $0x30] sm:$0xff]
    %v136 = vld [vmem:[%s4 + $0x38] sm:$0xff]
    %v137 = vld [vmem:[%s4 + $0x40] sm:$0xff]
    %v138 = vld [vmem:[%s4 + $0x48] sm:$0xff]
    %v139 = vld [vmem:[%s4 + $0x50] sm:$0xff]
    %v140 = vld [vmem:[%s4 + $0x58] sm:$0xff]
    %v141 = vld [vmem:[%s4 + $0x60] sm:$0xff]
    %v142 = vld [vmem:[%s4 + $0x68] sm:$0xff]
    %v143 = vld [vmem:[%s4 + $0x70] sm:$0xff]
    %v144 = vld [vmem:[%s4 + $0x78] sm:$0xff]
    %v145 = vlaneseq
    %v146 = vshrl.u32 %v145, 7
    %v147 = vsub.s32 0, %v146
    %v148 = vrot.slane %v126, %v147
    %v149 = vadd.f32 %v148, %v129
    %v150 = vadd.f32 %v148, %v130
    %v151 = vadd.f32 %v148, %v131
    %v152 = vadd.f32 %v148, %v132
    %v153 = vadd.f32 %v148, %v133
    %v154 = vadd.f32 %v148, %v134
    %v155 = vadd.f32 %v148, %v135
    %v156 = vadd.f32 %v148, %v136
    %v157 = vadd.f32 %v148, %v137
    %v158 = vadd.f32 %v148, %v138
    %v159 = vadd.f32 %v148, %v139
    %v160 = vadd.f32 %v148, %v140
    %v161 = vadd.f32 %v148, %v141
    %v162 = vadd.f32 %v148, %v142
    %v163 = vadd.f32 %v148, %v143
    %v164 = vadd.f32 %v148, %v144
    %v165 = vtanh.pop %v149
    %v166 = vtanh.pop %v150
    %v167 = vtanh.pop %v151
    %v168 = vtanh.pop %v152
    %v169 = vtanh.pop %v153
    %v170 = vtanh.pop %v154
    %v171 = vtanh.pop %v155
    %v172 = vtanh.pop %v156
    %v173 = vtanh.pop %v157
    %v174 = vtanh.pop %v158
    %v175 = vtanh.pop %v159
    %v176 = vtanh.pop %v160
    %v177 = vtanh.pop %v161
    %v178 = vtanh.pop %v162
    %v179 = vtanh.pop %v163
    %v180 = vtanh.pop %v164
    %v181 = vld [vmem:[%s6] sm:$0x1]
    %v183 = vsel %vm45, %v181, 0
    %v186 = vsel %vm45, %v165, 0
    %v189 = vsel %vm45, %v166, 0
    %v192 = vsel %vm45, %v167, 0
    %v195 = vsel %vm45, %v168, 0
    %v198 = vsel %vm45, %v169, 0
    %v201 = vsel %vm45, %v170, 0
    %v204 = vsel %vm45, %v171, 0
    %v207 = vsel %vm45, %v172, 0
    %v210 = vsel %vm45, %v173, 0
    %v213 = vsel %vm45, %v174, 0
    %v216 = vsel %vm45, %v175, 0
    %v219 = vsel %vm45, %v176, 0
    %v222 = vsel %vm45, %v177, 0
    %v225 = vsel %vm45, %v178, 0
    %v228 = vsel %vm45, %v179, 0
    %v231 = vsel %vm45, %v180, 0
    %233 = vmatprep.subr.mxu0 0.0
    %234 = vmatpush1.xpose.msra.mxu0 %v186
    %235 = vmatprep.subr.mxu0 0.0
    %236 = vmatpush1.xpose.msra.mxu0 %v189
    %237 = vmatprep.subr.mxu0 0.0
    %238 = vmatpush1.xpose.msra.mxu0 %v192
    %239 = vmatprep.subr.mxu0 0.0
    %240 = vmatpush1.xpose.msra.mxu0 %v195
    %241 = vmatprep.subr.mxu0 0.0
    %242 = vmatpush1.xpose.msra.mxu0 %v198
    %243 = vmatprep.subr.mxu0 0.0
    %244 = vmatpush1.xpose.msra.mxu0 %v201
    %245 = vmatprep.subr.mxu0 0.0
    %246 = vmatpush1.xpose.msra.mxu0 %v204
    %247 = vmatprep.subr.mxu0 0.0
    %248 = vmatpush1.xpose.msra.mxu0 %v207
    %249 = vmatprep.subr.mxu0 0.0
    %250 = vmatpush1.xpose.msra.mxu0 %v210
    %251 = vmatprep.subr.mxu0 0.0
    %252 = vmatpush1.xpose.msra.mxu0 %v213
    %253 = vmatprep.subr.mxu0 0.0
    %254 = vmatpush1.xpose.msra.mxu0 %v216
    %255 = vmatprep.subr.mxu0 0.0
    %256 = vmatpush1.xpose.msra.mxu0 %v219
    %257 = vmatprep.subr.mxu0 0.0
    %258 = vmatpush1.xpose.msra.mxu0 %v222
    %259 = vmatprep.subr.mxu0 0.0
    %260 = vmatpush1.xpose.msra.mxu0 %v225
    %261 = vmatprep.subr.mxu0 0.0
    %262 = vmatpush1.xpose.msra.mxu0 %v228
    %263 = vmatprep.subr.mxu0 0.0
    %264 = vmatpush1.xpose.msra.mxu0 %v231
    %265 = vmatprep.subr.mxu0 0.0
    %266 = vmatpush1.xpose.msra.mxu0 0.0
    %267 = vmatprep.subr.mxu0 0.0
    %268 = vmatpush1.xpose.msra.mxu0 0.0
    %269 = vmatprep.subr.mxu0 0.0
    %270 = vmatpush1.xpose.msra.mxu0 0.0
    %271 = vmatprep.subr.mxu0 0.0
    %272 = vmatpush1.xpose.msra.mxu0 0.0
    %273 = vmatprep.subr.mxu0 0.0
    %274 = vmatpush1.xpose.msra.mxu0 0.0
    %275 = vmatprep.subr.mxu0 0.0
    %276 = vmatpush1.xpose.msra.mxu0 0.0
    %277 = vmatprep.subr.mxu0 0.0
    %278 = vmatpush1.xpose.msra.mxu0 0.0
    %279 = vmatprep.subr.mxu0 0.0
    %280 = vmatpush1.xpose.msra.mxu0 0.0
    %281 = vmatprep.subr.mxu0 0.0
    %282 = vmatpush1.xpose.msra.mxu0 0.0
    %283 = vmatprep.subr.mxu0 0.0
    %284 = vmatpush1.xpose.msra.mxu0 0.0
    %285 = vmatprep.subr.mxu0 0.0
    %286 = vmatpush1.xpose.msra.mxu0 0.0
    %287 = vmatprep.subr.mxu0 0.0
    %288 = vmatpush1.xpose.msra.mxu0 0.0
    %289 = vmatprep.subr.mxu0 0.0
    %290 = vmatpush1.xpose.msra.mxu0 0.0
    %291 = vmatprep.subr.mxu0 0.0
    %292 = vmatpush1.xpose.msra.mxu0 0.0
    %293 = vmatprep.subr.mxu0 0.0
    %294 = vmatpush1.xpose.msra.mxu0 0.0
    %295 = vmatprep.subr.mxu0 0.0
    %296 = vmatpush1.xpose.msra.mxu0 0.0
    %297 = vmatprep.mubr.f32.mxu0 0.0
    %298 = vmatmul.mubr.f32.gmra.mrb[0].mxu0 %v183
    %v299 = vpop.f32.mrb[0].mxu0
    %v300 = vadd.f32 0.0, %v299
    %v301 = vpop.f32.mrb[0].mxu0
    %302 = vdwg.mxu0
    %v303 = vsel %vm49, %v300, -1e+30
    %vm304 = vcmask 1040384
    %v305 = vsel %vm304, %v303, -inf
    %306 = vmax.xlane.f32.xlu0 %v305
    %v307 = vpop.xlane.xlu0 %306
    %v308 = vsub.f32 %v303, %v307
    %v309 = vmul.f32 %v308, 1.442695
    %v310 = vpow.pop %v309
    %v311 = vsel %vm304, %v310, 0.0
    %312 = vadd.xlane.f32.xlu0 %v311
    %v313 = vpop.xlane.xlu0 %312
    %v314 = vrcp.pop %v313
    %v315 = vmul.f32 %v313, %v314
    %v316 = vsub.f32 2.0, %v315
    %v317 = vmul.f32 %v314, %v316
    %v318 = vmul.f32 %v310, %v317
    %319 = vst [vmem:[#allocation5] sm:$0x1] %v318
    %v320 = vld [vmem:[%s3] sm:$0xff]
    %v321 = vld [vmem:[%s3 + $0x8] sm:$0xff]
    %v322 = vld [vmem:[%s3 + $0x10] sm:$0xff]
    %v323 = vld [vmem:[%s3 + $0x18] sm:$0xff]
    %v324 = vld [vmem:[%s3 + $0x20] sm:$0xff]
    %v325 = vld [vmem:[%s3 + $0x28] sm:$0xff]
    %v326 = vld [vmem:[%s3 + $0x30] sm:$0xff]
    %v327 = vld [vmem:[%s3 + $0x38] sm:$0xff]
    %v328 = vld [vmem:[%s3 + $0x40] sm:$0xff]
    %v329 = vld [vmem:[%s3 + $0x48] sm:$0xff]
    %v330 = vld [vmem:[%s3 + $0x50] sm:$0xff]
    %v331 = vld [vmem:[%s3 + $0x58] sm:$0xff]
    %v332 = vld [vmem:[%s3 + $0x60] sm:$0xff]
    %v333 = vld [vmem:[%s3 + $0x68] sm:$0xff]
    %v334 = vld [vmem:[%s3 + $0x70] sm:$0xff]
    %v335 = vld [vmem:[%s3 + $0x78] sm:$0xff]
    %336 = vmatprep.subr.mxu0 0.0
    %337 = vmatpush1.msra.mxu0 %v320
    %338 = vmatprep.subr.mxu0 0.0
    %339 = vmatpush1.msra.mxu0 %v321
    %340 = vmatprep.subr.mxu0 0.0
    %341 = vmatpush1.msra.mxu0 %v322
    %342 = vmatprep.subr.mxu0 0.0
    %343 = vmatpush1.msra.mxu0 %v323
    %344 = vmatprep.subr.mxu0 0.0
    %345 = vmatpush1.msra.mxu0 %v324
    %346 = vmatprep.subr.mxu0 0.0
    %347 = vmatpush1.msra.mxu0 %v325
    %348 = vmatprep.subr.mxu0 0.0
    %349 = vmatpush1.msra.mxu0 %v326
    %350 = vmatprep.subr.mxu0 0.0
    %351 = vmatpush1.msra.mxu0 %v327
    %352 = vmatprep.subr.mxu0 0.0
    %353 = vmatpush1.msra.mxu0 %v328
    %354 = vmatprep.subr.mxu0 0.0
    %355 = vmatpush1.msra.mxu0 %v329
    %356 = vmatprep.subr.mxu0 0.0
    %357 = vmatpush1.msra.mxu0 %v330
    %358 = vmatprep.subr.mxu0 0.0
    %359 = vmatpush1.msra.mxu0 %v331
    %360 = vmatprep.subr.mxu0 0.0
    %361 = vmatpush1.msra.mxu0 %v332
    %362 = vmatprep.subr.mxu0 0.0
    %363 = vmatpush1.msra.mxu0 %v333
    %364 = vmatprep.subr.mxu0 0.0
    %365 = vmatpush1.msra.mxu0 %v334
    %366 = vmatprep.subr.mxu0 0.0
    %367 = vmatpush1.msra.mxu0 %v335
    %368 = vmatprep.subr.mxu0 0.0
    %369 = vmatpush1.msra.mxu0 0.0
    %370 = vmatprep.subr.mxu0 0.0
    %371 = vmatpush1.msra.mxu0 0.0
    %372 = vmatprep.subr.mxu0 0.0
    %373 = vmatpush1.msra.mxu0 0.0
    %374 = vmatprep.subr.mxu0 0.0
    %375 = vmatpush1.msra.mxu0 0.0
    %376 = vmatprep.subr.mxu0 0.0
    %377 = vmatpush1.msra.mxu0 0.0
    %378 = vmatprep.subr.mxu0 0.0
    %379 = vmatpush1.msra.mxu0 0.0
    %380 = vmatprep.subr.mxu0 0.0
    %381 = vmatpush1.msra.mxu0 0.0
    %382 = vmatprep.subr.mxu0 0.0
    %383 = vmatpush1.msra.mxu0 0.0
    %384 = vmatprep.subr.mxu0 0.0
    %385 = vmatpush1.msra.mxu0 0.0
    %386 = vmatprep.subr.mxu0 0.0
    %387 = vmatpush1.msra.mxu0 0.0
    %388 = vmatprep.subr.mxu0 0.0
    %389 = vmatpush1.msra.mxu0 0.0
    %390 = vmatprep.subr.mxu0 0.0
    %391 = vmatpush1.msra.mxu0 0.0
    %392 = vmatprep.subr.mxu0 0.0
    %393 = vmatpush1.msra.mxu0 0.0
    %394 = vmatprep.subr.mxu0 0.0
    %395 = vmatpush1.msra.mxu0 0.0
    %396 = vmatprep.subr.mxu0 0.0
    %397 = vmatpush1.msra.mxu0 0.0
    %398 = vmatprep.subr.mxu0 0.0
    %399 = vmatpush1.msra.mxu0 0.0
    %400 = vmatprep.mubr.f32.mxu0 0.0
    %401 = vmatmul.mubr.f32.gmra.mrb[0].mxu0 %v318
    %v402 = vpop.f32.mrb[0].mxu0
    %v403 = vadd.f32 0.0, %v402
    %v404 = vpop.f32.mrb[0].mxu0
    %405 = vdwg.mxu0
    %v406 = vld [vmem:[%s0] sm:$0x1]
    %v407 = vld [vmem:[%s7] sm:$0xff]
    %v408 = vld [vmem:[%s7 + $0x8] sm:$0xff]
    %v409 = vld [vmem:[%s7 + $0x10] sm:$0xff]
    %v410 = vld [vmem:[%s7 + $0x18] sm:$0xff]
    %v412 = vsel %vm45, %v403, 0
    %414 = vmatprep.subr.mxu0 0.0
    %415 = vmatpush1.msra.mxu0 %v407
    %416 = vmatprep.subr.mxu0 0.0
    %417 = vmatpush1.msra.mxu0 %v408
    %418 = vmatprep.subr.mxu0 0.0
    %419 = vmatpush1.msra.mxu0 %v409
    %420 = vmatprep.subr.mxu0 0.0
    %421 = vmatpush1.msra.mxu0 %v410
    %422 = vmatprep.subr.mxu0 0.0
    %423 = vmatpush1.msra.mxu0 0.0
    %424 = vmatprep.subr.mxu0 0.0
    %425 = vmatpush1.msra.mxu0 0.0
    %426 = vmatprep.subr.mxu0 0.0
    %427 = vmatpush1.msra.mxu0 0.0
    %428 = vmatprep.subr.mxu0 0.0
    %429 = vmatpush1.msra.mxu0 0.0
    %430 = vmatprep.subr.mxu0 0.0
    %431 = vmatpush1.msra.mxu0 0.0
    %432 = vmatprep.subr.mxu0 0.0
    %433 = vmatpush1.msra.mxu0 0.0
    %434 = vmatprep.subr.mxu0 0.0
    %435 = vmatpush1.msra.mxu0 0.0
    %436 = vmatprep.subr.mxu0 0.0
    %437 = vmatpush1.msra.mxu0 0.0
    %438 = vmatprep.subr.mxu0 0.0
    %439 = vmatpush1.msra.mxu0 0.0
    %440 = vmatprep.subr.mxu0 0.0
    %441 = vmatpush1.msra.mxu0 0.0
    %442 = vmatprep.subr.mxu0 0.0
    %443 = vmatpush1.msra.mxu0 0.0
    %444 = vmatprep.subr.mxu0 0.0
    %445 = vmatpush1.msra.mxu0 0.0
    %446 = vmatprep.subr.mxu0 0.0
    %447 = vmatpush1.msra.mxu0 0.0
    %448 = vmatprep.subr.mxu0 0.0
    %449 = vmatpush1.msra.mxu0 0.0
    %450 = vmatprep.subr.mxu0 0.0
    %451 = vmatpush1.msra.mxu0 0.0
    %452 = vmatprep.subr.mxu0 0.0
    %453 = vmatpush1.msra.mxu0 0.0
    %454 = vmatprep.subr.mxu0 0.0
    %455 = vmatpush1.msra.mxu0 0.0
    %456 = vmatprep.subr.mxu0 0.0
    %457 = vmatpush1.msra.mxu0 0.0
    %458 = vmatprep.subr.mxu0 0.0
    %459 = vmatpush1.msra.mxu0 0.0
    %460 = vmatprep.subr.mxu0 0.0
    %461 = vmatpush1.msra.mxu0 0.0
    %462 = vmatprep.subr.mxu0 0.0
    %463 = vmatpush1.msra.mxu0 0.0
    %464 = vmatprep.subr.mxu0 0.0
    %465 = vmatpush1.msra.mxu0 0.0
    %466 = vmatprep.subr.mxu0 0.0
    %467 = vmatpush1.msra.mxu0 0.0
    %468 = vmatprep.subr.mxu0 0.0
    %469 = vmatpush1.msra.mxu0 0.0
    %470 = vmatprep.subr.mxu0 0.0
    %471 = vmatpush1.msra.mxu0 0.0
    %472 = vmatprep.subr.mxu0 0.0
    %473 = vmatpush1.msra.mxu0 0.0
    %474 = vmatprep.subr.mxu0 0.0
    %475 = vmatpush1.msra.mxu0 0.0
    %476 = vmatprep.subr.mxu0 0.0
    %477 = vmatpush1.msra.mxu0 0.0
    %478 = vmatprep.mubr.f32.mxu0 0.0
    %479 = vmatmul.mubr.f32.gmra.mrb[0].mxu0 %v412
    %v480 = vpop.f32.mrb[0].mxu0
    %v481 = vadd.f32 0.0, %v480
    %v482 = vpop.f32.mrb[0].mxu0
    %483 = vdwg.mxu0
    %v484 = vadd.f32 %v406, %v481
    %v485 = vld [vmem:[%s8] sm:$0xff]
    %v486 = vld [vmem:[%s8 + $0x8] sm:$0xff]
    %v487 = vld [vmem:[%s8 + $0x10] sm:$0xff]
    %v488 = vld [vmem:[%s8 + $0x18] sm:$0xff]
    %489 = vmatprep.subr.mxu0 0.0
    %490 = vmatpush1.msra.mxu0 %v485
    %491 = vmatprep.subr.mxu0 0.0
    %492 = vmatpush1.msra.mxu0 %v486
    %493 = vmatprep.subr.mxu0 0.0
    %494 = vmatpush1.msra.mxu0 %v487
    %495 = vmatprep.subr.mxu0 0.0
    %496 = vmatpush1.msra.mxu0 %v488
    %497 = vmatprep.subr.mxu0 0.0
    %498 = vmatpush1.msra.mxu0 0.0
    %499 = vmatprep.subr.mxu0 0.0
    %500 = vmatpush1.msra.mxu0 0.0
    %501 = vmatprep.subr.mxu0 0.0
    %502 = vmatpush1.msra.mxu0 0.0
    %503 = vmatprep.subr.mxu0 0.0
    %504 = vmatpush1.msra.mxu0 0.0
    %505 = vmatprep.subr.mxu0 0.0
    %506 = vmatpush1.msra.mxu0 0.0
    %507 = vmatprep.subr.mxu0 0.0
    %508 = vmatpush1.msra.mxu0 0.0
    %509 = vmatprep.subr.mxu0 0.0
    %510 = vmatpush1.msra.mxu0 0.0
    %511 = vmatprep.subr.mxu0 0.0
    %512 = vmatpush1.msra.mxu0 0.0
    %513 = vmatprep.subr.mxu0 0.0
    %514 = vmatpush1.msra.mxu0 0.0
    %515 = vmatprep.subr.mxu0 0.0
    %516 = vmatpush1.msra.mxu0 0.0
    %517 = vmatprep.subr.mxu0 0.0
    %518 = vmatpush1.msra.mxu0 0.0
    %519 = vmatprep.subr.mxu0 0.0
    %520 = vmatpush1.msra.mxu0 0.0
    %521 = vmatprep.subr.mxu0 0.0
    %522 = vmatpush1.msra.mxu0 0.0
    %523 = vmatprep.subr.mxu0 0.0
    %524 = vmatpush1.msra.mxu0 0.0
    %525 = vmatprep.subr.mxu0 0.0
    %526 = vmatpush1.msra.mxu0 0.0
    %527 = vmatprep.subr.mxu0 0.0
    %528 = vmatpush1.msra.mxu0 0.0
    %529 = vmatprep.subr.mxu0 0.0
    %530 = vmatpush1.msra.mxu0 0.0
    %531 = vmatprep.subr.mxu0 0.0
    %532 = vmatpush1.msra.mxu0 0.0
    %533 = vmatprep.subr.mxu0 0.0
    %534 = vmatpush1.msra.mxu0 0.0
    %535 = vmatprep.subr.mxu0 0.0
    %536 = vmatpush1.msra.mxu0 0.0
    %537 = vmatprep.subr.mxu0 0.0
    %538 = vmatpush1.msra.mxu0 0.0
    %539 = vmatprep.subr.mxu0 0.0
    %540 = vmatpush1.msra.mxu0 0.0
    %541 = vmatprep.subr.mxu0 0.0
    %542 = vmatpush1.msra.mxu0 0.0
    %543 = vmatprep.subr.mxu0 0.0
    %544 = vmatpush1.msra.mxu0 0.0
    %545 = vmatprep.subr.mxu0 0.0
    %546 = vmatpush1.msra.mxu0 0.0
    %547 = vmatprep.subr.mxu0 0.0
    %548 = vmatpush1.msra.mxu0 0.0
    %549 = vmatprep.subr.mxu0 0.0
    %550 = vmatpush1.msra.mxu0 0.0
    %551 = vmatprep.subr.mxu0 0.0
    %552 = vmatpush1.msra.mxu0 0.0
    %553 = vmatprep.mubr.f32.mxu0 0.0
    %554 = vmatmul.mubr.f32.gmra.mrb[0].mxu0 %v57
    %v555 = vpop.f32.mrb[0].mxu0
    %v556 = vadd.f32 0.0, %v555
    %v557 = vpop.f32.mrb[0].mxu0
    %558 = vdwg.mxu0
    %v559 = vadd.f32 %v484, %v556
    %v560 = vxor.u32 %v559, 2147483648
    %v561 = vmul.f32 %v560, 1.442695
    %v562 = vpow.pop %v561
    %v563 = vadd.f32 %v562, 1.0
    %v564 = vrcp.pop %v563
    %v565 = vmul.f32 1.0, %v564
    %v566 = vtanh.pop %v559
    %568 = vrot.lane.b32.xlu0 %v51, 32
    %v569 = vpop.permute.xlu0 %568
    %v571 = vmul.f32 %v565, %v569
    %573 = vrot.lane.b32.xlu0 %v566, 64
    %v574 = vpop.permute.xlu0 %573
    %v576 = vmul.f32 %v565, %v574
    %578 = vrot.lane.b32.xlu0 %v576, 32
    %v579 = vpop.permute.xlu0 %578
    %v581 = vadd.f32 %v571, %v579
    %v582 = vtanh.pop %v581
    %584 = vrot.lane.b32.xlu0 %v582, 64
    %v585 = vpop.permute.xlu0 %584
    %v587 = vmul.f32 %v565, %v585
    %v589 = vlaneseq
    %v590 = vshrl.u32 %v589, 7
    %v591 = vsub.s32 0, %v590
    %v592 = vrot.slane %v587, %v591
    %593 = vrot.lane.b32.xlu0 %v592, 32
    %v594 = vpop.permute.xlu0 %593
    %vm596 = vcmask 253952
    %597 = vst.msk [vmem:[#allocation2] sm:$0x1] %vm596, %v594
    %598 = vst.msk [vmem:[#allocation7] sm:$0x1] %vm596, %v594
    %v600 = vlaneseq
    %v601 = vshrl.u32 %v600, 7
    %v602 = vsub.s32 0, %v601
    %v603 = vrot.slane %v581, %v602
    %604 = vrot.lane.b32.xlu0 %v603, 96
    %v605 = vpop.permute.xlu0 %604
    %607 = vst.msk [vmem:[#allocation8] sm:$0x1] %vm596, %v605
    %v608 = vld [vmem:[#allocation2] sm:$0xff]
    %v609 = vld [vmem:[%s9] sm:$0xff]
    %v610 = vld [vmem:[%s9 + $0x8] sm:$0xff]
    %v611 = vld [vmem:[%s9 + $0x10] sm:$0xff]
    %v612 = vld [vmem:[%s9 + $0x18] sm:$0xff]
    %v613 = vld [vmem:[%s10] sm:$0x1]
    %v615 = vlaneseq
    %v616 = vshrl.u32 %v615, 7
    %v617 = vsub.s32 0, %v616
    %v618 = vrot.slane %v613, %v617
    %v621 = vsel %vm45, %v608, 0
    %623 = vmatprep.subr.mxu0 0.0
    %624 = vmatpush1.msra.mxu0 %v609
    %625 = vmatprep.subr.mxu0 0.0
    %626 = vmatpush1.msra.mxu0 %v610
    %627 = vmatprep.subr.mxu0 0.0
    %628 = vmatpush1.msra.mxu0 %v611
    %629 = vmatprep.subr.mxu0 0.0
    %630 = vmatpush1.msra.mxu0 %v612
    %631 = vmatprep.subr.mxu0 0.0
    %632 = vmatpush1.msra.mxu0 0.0
    %633 = vmatprep.subr.mxu0 0.0
    %634 = vmatpush1.msra.mxu0 0.0
    %635 = vmatprep.subr.mxu0 0.0
    %636 = vmatpush1.msra.mxu0 0.0
    %637 = vmatprep.subr.mxu0 0.0
    %638 = vmatpush1.msra.mxu0 0.0
    %639 = vmatprep.subr.mxu0 0.0
    %640 = vmatpush1.msra.mxu0 0.0
    %641 = vmatprep.subr.mxu0 0.0
    %642 = vmatpush1.msra.mxu0 0.0
    %643 = vmatprep.subr.mxu0 0.0
    %644 = vmatpush1.msra.mxu0 0.0
    %645 = vmatprep.subr.mxu0 0.0
    %646 = vmatpush1.msra.mxu0 0.0
    %647 = vmatprep.subr.mxu0 0.0
    %648 = vmatpush1.msra.mxu0 0.0
    %649 = vmatprep.subr.mxu0 0.0
    %650 = vmatpush1.msra.mxu0 0.0
    %651 = vmatprep.subr.mxu0 0.0
    %652 = vmatpush1.msra.mxu0 0.0
    %653 = vmatprep.subr.mxu0 0.0
    %654 = vmatpush1.msra.mxu0 0.0
    %655 = vmatprep.subr.mxu0 0.0
    %656 = vmatpush1.msra.mxu0 0.0
    %657 = vmatprep.subr.mxu0 0.0
    %658 = vmatpush1.msra.mxu0 0.0
    %659 = vmatprep.subr.mxu0 0.0
    %660 = vmatpush1.msra.mxu0 0.0
    %661 = vmatprep.subr.mxu0 0.0
    %662 = vmatpush1.msra.mxu0 0.0
    %663 = vmatprep.subr.mxu0 0.0
    %664 = vmatpush1.msra.mxu0 0.0
    %665 = vmatprep.subr.mxu0 0.0
    %666 = vmatpush1.msra.mxu0 0.0
    %667 = vmatprep.subr.mxu0 0.0
    %668 = vmatpush1.msra.mxu0 0.0
    %669 = vmatprep.subr.mxu0 0.0
    %670 = vmatpush1.msra.mxu0 0.0
    %671 = vmatprep.subr.mxu0 0.0
    %672 = vmatpush1.msra.mxu0 0.0
    %673 = vmatprep.subr.mxu0 0.0
    %674 = vmatpush1.msra.mxu0 0.0
    %675 = vmatprep.subr.mxu0 0.0
    %676 = vmatpush1.msra.mxu0 0.0
    %677 = vmatprep.subr.mxu0 0.0
    %678 = vmatpush1.msra.mxu0 0.0
    %679 = vmatprep.subr.mxu0 0.0
    %680 = vmatpush1.msra.mxu0 0.0
    %681 = vmatprep.subr.mxu0 0.0
    %682 = vmatpush1.msra.mxu0 0.0
    %683 = vmatprep.subr.mxu0 0.0
    %684 = vmatpush1.msra.mxu0 0.0
    %685 = vmatprep.subr.mxu0 0.0
    %686 = vmatpush1.msra.mxu0 0.0
    %687 = vmatprep.mubr.f32.mxu0 0.0
    %688 = vmatmul.mubr.f32.gmra.mrb[0].mxu0 %v621
    %v689 = vpop.f32.mrb[0].mxu0
    %v690 = vadd.f32 %v618, %v689
    %v691 = vpop.f32.mrb[0].mxu0
    %692 = vdwg.mxu0
    %693 = vst [vmem:[#allocation3] sm:$0xff] %v690
    // Predicated region
    $region46: #{tpu_custom_call.1} parent=1 // pred_check
      _
    $region47: #{tpu_custom_call.1} parent=1 // pred_check_branch
      %695 = sbr.rel (0) target = $region49
    $region48: #{tpu_custom_call.1} parent=1 // pred_region
      %s697 = ssub.s32 128, 128
      %698 = vsyncadd [#allocation4], %s697
      %s700 = sshll.u32 [#allocation3], 4
      %s701 = int_to_ptr.vmem [resolvable:$true] %s700
      %703 = dma.vmem_to_hbm [thread:$0]  %s701, 128, %s11, [#allocation4]
    $region49: #{tpu_custom_call.1} parent=1 // pred_fallthru
      _
    // Predicated region
    $region50: #{tpu_custom_call.1} parent=1 // pred_check
      _
    $region51: #{tpu_custom_call.1} parent=1 // pred_check_branch
      %705 = sbr.rel (0) target = $region53
    $region52: #{tpu_custom_call.1} parent=1 // pred_region
      %s707 = ssub.s32 128, 128
      %708 = vsyncadd [#allocation6], %s707
      %s710 = sshll.u32 [#allocation5], 4
      %s711 = int_to_ptr.vmem [resolvable:$true] %s710
      %713 = dma.vmem_to_hbm [thread:$0]  %s711, 128, %s12, [#allocation6]
    $region53: #{tpu_custom_call.1} parent=1 // pred_fallthru
      _
    // Predicated region
    $region54: #{tpu_custom_call.1} parent=1 // pred_check
      _
    $region55: #{tpu_custom_call.1} parent=1 // pred_check_branch
      %715 = sbr.rel (0) target = $region57
    $region56: #{tpu_custom_call.1} parent=1 // pred_region
      %s717 = ssub.s32 16, 16
      %718 = vsyncadd [#allocation6], %s717
      %s720 = sshll.u32 [#allocation7], 4
      %s721 = int_to_ptr.vmem [resolvable:$true] %s720
      %723 = dma.vmem_to_hbm [thread:$0]  %s721, 16, %s13, [#allocation6]
    $region57: #{tpu_custom_call.1} parent=1 // pred_fallthru
      _
    // Predicated region
    $region58: #{tpu_custom_call.1} parent=1 // pred_check
      _
    $region59: #{tpu_custom_call.1} parent=1 // pred_check_branch
      %725 = sbr.rel (0) target = $region61
    $region60: #{tpu_custom_call.1} parent=1 // pred_region
      %s727 = ssub.s32 16, 16
      %728 = vsyncadd [#allocation9], %s727
      %s730 = sshll.u32 [#allocation8], 4
      %s731 = int_to_ptr.vmem [resolvable:$true] %s730
      %733 = dma.vmem_to_hbm [thread:$0]  %s731, 16, %s14, [#allocation9]
    $region61: #{tpu_custom_call.1} parent=1 // pred_fallthru
      _
    // Predicated region
    $region62: #{tpu_custom_call.1} parent=1 // pred_check
      _
    $region63: #{tpu_custom_call.1} parent=1 // pred_check_branch
      %735 = sbr.rel (0) target = $region65
    $region64: #{tpu_custom_call.1} parent=1 // pred_region
      %736 = dma.done [#allocation4], 128
    $region65: #{tpu_custom_call.1} parent=1 // pred_fallthru
      _
    // Predicated region
    $region66: #{tpu_custom_call.1} parent=1 // pred_check
      _
    $region67: #{tpu_custom_call.1} parent=1 // pred_check_branch
      %738 = sbr.rel (0) target = $region69
    $region68: #{tpu_custom_call.1} parent=1 // pred_region
      %739 = dma.done [#allocation6], 128
    $region69: #{tpu_custom_call.1} parent=1 // pred_fallthru
      _
    // Predicated region
    $region70: #{tpu_custom_call.1} parent=1 // pred_check
      _
    $region71: #{tpu_custom_call.1} parent=1 // pred_check_branch
      %741 = sbr.rel (0) target = $region73
    $region72: #{tpu_custom_call.1} parent=1 // pred_region
      %742 = dma.done [#allocation6], 16
    $region73: #{tpu_custom_call.1} parent=1 // pred_fallthru
      _
    // Predicated region
    $region74: #{tpu_custom_call.1} parent=1 // pred_check
      _
    $region75: #{tpu_custom_call.1} parent=1 // pred_check_branch
      %744 = sbr.rel (0) target = $region77
    $region76: #{tpu_custom_call.1} parent=1 // pred_region
      %745 = dma.done [#allocation9], 16
    $region77: #{tpu_custom_call.1} parent=1 // pred_fallthru
      _
    %746 = vsyncpa [#allocation4], 1
    %747 = vsyncpa [#allocation6], 1
    %748 = vsyncpa [#allocation9], 1

</llo_original>
